<compile_context>
chip_gen: v7x
topology: tpu7x:2x2x1
jax: 0.10.0
libtpu: 0.0.40
codegen_flags: <defaults>
</compile_context>

<pallas_src>
import jax
import jax.numpy as jnp
from jax.experimental import pallas as pl
from jax.experimental.pallas import tpu as pltpu

NARROW_DIM = 0
NARROW_START = 0      # aten.narrow(x, dim=0, start=0, length=2)
NARROW_LEN = 2


def _narrow_dma_kernel(x_ref, o_ref, sem):
    # x_ref: (d0, F) in HBM; o_ref: (NARROW_LEN, F) in HBM; sem: (NARROW_LEN,) DMA sems.
    # One contiguous HBM->HBM DMA per kept row; start all, then wait all so the
    # copies are in flight concurrently.
    copies = []
    for r in range(NARROW_LEN):
        cp = pltpu.make_async_copy(
            x_ref.at[pl.ds(NARROW_START + r, 1)],   # contiguous source row
            o_ref.at[pl.ds(r, 1)],                  # contiguous destination row
            sem.at[r],
        )
        cp.start()
        copies.append(cp)
    for cp in copies:
        cp.wait()


def narrow_horizontal(x: jax.Array, *, allow_xla_fast_path: bool = False) -> jax.Array:
    """Pallas equivalent of torch.narrow(x, dim=0, start=0, length=2)."""
    assert x.ndim == 3, "NarrowHorizontalTest input is rank-3"
    d0, d1, d2 = x.shape
    assert d0 >= NARROW_START + NARROW_LEN, "input too short along dim=0"

    # Optional wrapper fast path for tiny inputs (XLA fuses a bare slice for
    # free).  Kept off by default so the Pallas kernel is exercised here.
    if allow_xla_fast_path and NARROW_LEN * d1 * d2 * x.dtype.itemsize < (256 << 10):
        return x[NARROW_START:NARROW_START + NARROW_LEN]

    feat = d1 * d2
    x2 = x.reshape(d0, feat)   # contiguous reshape -> free layout bitcast

    out2 = pl.pallas_call(
        _narrow_dma_kernel,
        out_shape=jax.ShapeDtypeStruct((NARROW_LEN, feat), x.dtype),
        in_specs=[pl.BlockSpec(memory_space=pl.ANY)],
        out_specs=pl.BlockSpec(memory_space=pl.ANY),
        scratch_shapes=[pltpu.SemaphoreType.DMA((NARROW_LEN,))],
    )(x2)

    return out2.reshape(NARROW_LEN, d1, d2)


if __name__ == "__main__":
    key = jax.random.PRNGKey(0)
    # Module annotates input as rank-3 float32; the upstream e2e test feeds (6, 4, 3).
    x = jax.random.normal(key, (6, 4, 3), dtype=jnp.float32)

    out = jax.block_until_ready(narrow_horizontal(x))

    # Reference check against torch.narrow(x, 0, 0, 2) semantics.
    ref = x[NARROW_START:NARROW_START + NARROW_LEN, :, :]
    assert out.shape == (NARROW_LEN, 4, 3) and out.dtype == jnp.float32
    assert jnp.array_equal(out, ref)

    print("KERNEL_OK")
</pallas_src>

<mosaic_0001>
module attributes {stable_mosaic.version = 11 : i64} {
  func.func @_narrow_dma_kernel(%arg0: memref<6x12xf32, #tpu.memory_space<any>>, %arg1: memref<2x12xf32, #tpu.memory_space<any>>, %arg2: memref<2x!tpu.dma_semaphore, #tpu.memory_space<semaphore_mem>>) attributes {dimension_semantics = [], scalar_prefetch = 0 : i64, scratch_operands = 1 : i64, tpu.core_type = #tpu.core_type<tc>} {
    %c0_i32 = arith.constant 0 : i32
    %c0_i32_0 = arith.constant 0 : i32
    %c0_i32_1 = arith.constant 0 : i32
    %0 = tpu.memref_slice %arg0[%c0_i32_0, %c0_i32_1] : memref<6x12xf32, #tpu.memory_space<any>> -> memref<1x12xf32, #tpu.memory_space<any>>
    %c0_i32_2 = arith.constant 0 : i32
    %c0_i32_3 = arith.constant 0 : i32
    %1 = tpu.memref_slice %arg1[%c0_i32_2, %c0_i32_3] : memref<2x12xf32, #tpu.memory_space<any>> -> memref<1x12xf32, #tpu.memory_space<any>>
    %2 = tpu.memref_slice %arg2[%c0_i32] : memref<2x!tpu.dma_semaphore, #tpu.memory_space<semaphore_mem>> -> memref<1x!tpu.dma_semaphore, #tpu.memory_space<semaphore_mem>>
    %3 = tpu.memref_squeeze %2 : memref<1x!tpu.dma_semaphore, #tpu.memory_space<semaphore_mem>> -> memref<!tpu.dma_semaphore, #tpu.memory_space<semaphore_mem>>
    tpu.enqueue_dma source(%0 : memref<1x12xf32, #tpu.memory_space<any>>) target(%1 : memref<1x12xf32, #tpu.memory_space<any>>) target_semaphore(%3 : memref<!tpu.dma_semaphore, #tpu.memory_space<semaphore_mem>>)
    %c1_i32 = arith.constant 1 : i32
    %c1_i32_4 = arith.constant 1 : i32
    %c0_i32_5 = arith.constant 0 : i32
    %4 = tpu.memref_slice %arg0[%c1_i32_4, %c0_i32_5] : memref<6x12xf32, #tpu.memory_space<any>> -> memref<1x12xf32, #tpu.memory_space<any>>
    %c1_i32_6 = arith.constant 1 : i32
    %c0_i32_7 = arith.constant 0 : i32
    %5 = tpu.memref_slice %arg1[%c1_i32_6, %c0_i32_7] : memref<2x12xf32, #tpu.memory_space<any>> -> memref<1x12xf32, #tpu.memory_space<any>>
    %6 = tpu.memref_slice %arg2[%c1_i32] : memref<2x!tpu.dma_semaphore, #tpu.memory_space<semaphore_mem>> -> memref<1x!tpu.dma_semaphore, #tpu.memory_space<semaphore_mem>>
    %7 = tpu.memref_squeeze %6 : memref<1x!tpu.dma_semaphore, #tpu.memory_space<semaphore_mem>> -> memref<!tpu.dma_semaphore, #tpu.memory_space<semaphore_mem>>
    tpu.enqueue_dma source(%4 : memref<1x12xf32, #tpu.memory_space<any>>) target(%5 : memref<1x12xf32, #tpu.memory_space<any>>) target_semaphore(%7 : memref<!tpu.dma_semaphore, #tpu.memory_space<semaphore_mem>>)
    %c0_i32_8 = arith.constant 0 : i32
    %c0_i32_9 = arith.constant 0 : i32
    %c0_i32_10 = arith.constant 0 : i32
    %8 = tpu.memref_slice %arg0[%c0_i32_9, %c0_i32_10] : memref<6x12xf32, #tpu.memory_space<any>> -> memref<1x12xf32, #tpu.memory_space<any>>
    %c0_i32_11 = arith.constant 0 : i32
    %c0_i32_12 = arith.constant 0 : i32
    %9 = tpu.memref_slice %arg1[%c0_i32_11, %c0_i32_12] : memref<2x12xf32, #tpu.memory_space<any>> -> memref<1x12xf32, #tpu.memory_space<any>>
    %10 = tpu.memref_slice %arg2[%c0_i32_8] : memref<2x!tpu.dma_semaphore, #tpu.memory_space<semaphore_mem>> -> memref<1x!tpu.dma_semaphore, #tpu.memory_space<semaphore_mem>>
    %11 = tpu.memref_squeeze %10 : memref<1x!tpu.dma_semaphore, #tpu.memory_space<semaphore_mem>> -> memref<!tpu.dma_semaphore, #tpu.memory_space<semaphore_mem>>
    tpu.wait_dma2 semaphore(%11 : memref<!tpu.dma_semaphore, #tpu.memory_space<semaphore_mem>>) src(%8 : memref<1x12xf32, #tpu.memory_space<any>>) dst(%9 : memref<1x12xf32, #tpu.memory_space<any>>)
    %c1_i32_13 = arith.constant 1 : i32
    %c1_i32_14 = arith.constant 1 : i32
    %c0_i32_15 = arith.constant 0 : i32
    %12 = tpu.memref_slice %arg0[%c1_i32_14, %c0_i32_15] : memref<6x12xf32, #tpu.memory_space<any>> -> memref<1x12xf32, #tpu.memory_space<any>>
    %c1_i32_16 = arith.constant 1 : i32
    %c0_i32_17 = arith.constant 0 : i32
    %13 = tpu.memref_slice %arg1[%c1_i32_16, %c0_i32_17] : memref<2x12xf32, #tpu.memory_space<any>> -> memref<1x12xf32, #tpu.memory_space<any>>
    %14 = tpu.memref_slice %arg2[%c1_i32_13] : memref<2x!tpu.dma_semaphore, #tpu.memory_space<semaphore_mem>> -> memref<1x!tpu.dma_semaphore, #tpu.memory_space<semaphore_mem>>
    %15 = tpu.memref_squeeze %14 : memref<1x!tpu.dma_semaphore, #tpu.memory_space<semaphore_mem>> -> memref<!tpu.dma_semaphore, #tpu.memory_space<semaphore_mem>>
    tpu.wait_dma2 semaphore(%15 : memref<!tpu.dma_semaphore, #tpu.memory_space<semaphore_mem>>) src(%12 : memref<1x12xf32, #tpu.memory_space<any>>) dst(%13 : memref<1x12xf32, #tpu.memory_space<any>>)
    return
  }
}

</mosaic_0001>

<llo_original>
// kernel: tpu_custom_call.1
$region0: #{tpu_custom_call.1}
  #allocation0 [shape = 'u32[]', space=smem, size = 0x4, offset = 0x4, fixed_abs, tag = 'smem constant byte address 0x4 - core index']
  #allocation1 [shape = 'u32[144,128]{1,0:T(1,128)}', space=vmem, size = 0x12000, scoped, tag = 'internal scratch']
  #allocation2 [shape = 's32[2]{0}', space=sflag, size = 0x8, scoped, tag = 'scratch operand']
  #allocation3 [shape = 's32[]', space=sflag, size = 0x4, offset = 0, fixed_abs, tag = 'sflag constant byte address 0x0 - dummy sync flag']
  #allocation4 [shape = 'u32[0]{0}', space=smem, size = 0, offset = 0, fixed_abs, tag = 'smem constant byte address 0x0 - null']
  #allocation5 [shape = 's32[]', space=sflag, size = 0x4, offset = 0, fixed_abs, tag = 'sflag constant byte address 0x0 - dummy sync flag']
  #allocation6 [shape = 'u32[0]{0}', space=smem, size = 0, offset = 0, fixed_abs, tag = 'smem constant byte address 0x0 - null']
  %s0 = inlined_call_operand.hbm [shape: f32[6,12], index: 0, kind: input, shape index: {}]
  %s1 = inlined_call_operand.hbm [shape: f32[2,12], index: 1, kind: output, shape index: {}]
  %s2 = sld [smem:[#allocation0]]
  $region2: #{tpu_custom_call.1} parent=0
    _
  %s4 = ssub.s32 1, %s2
  %s5 = scalar_select 0, %s4, %s2
  %s7 = sshll.u32 1, 14
  %s8 = sxor.u32 4294967295, %s7
  %s11 = sshll.u32 3, 24
  %s12 = sxor.u32 4294967295, %s11
  %s13 = sand.u32 0, %s12
  %s15 = sor.u32 %s13, 0
  %18 = dma.general %s0, 16, %s1, [#allocation2], [#allocation3], [#allocation4], %s15, 0
  %s19 = scalar_lea.hbm %s0, 16
  %s20 = scalar_lea.hbm %s1, 16
  %s21 = scalar_lea.sflag [#allocation2], 1
  %s23 = sshll.u32 1, 14
  %s24 = sxor.u32 4294967295, %s23
  %s27 = sshll.u32 3, 24
  %s28 = sxor.u32 4294967295, %s27
  %s29 = sand.u32 0, %s28
  %s31 = sor.u32 %s29, 0
  %34 = dma.general %s19, 16, %s20, %s21, [#allocation5], [#allocation6], %s31, 0
  %s35 = smul.u32 1, 1
  %s36 = sshll.u32 %s35, 4
  %37 = dma.done [#allocation2], %s36
  %s38 = sshll.u32 %s35, 4
  %39 = dma.done %s21, %s38
  %40 = vsyncmov [#allocation2]
  %s41 = vpop.sfrf %40
  %p42 = scmp.eq.s32.totalorder %s41, 0
  %p43 = pneg %p42
  %45 = shalt.err (%p43)
  %s46 = scalar_lea.sflag [#allocation2], 1
  %47 = vsyncmov %s46
  %s48 = vpop.sfrf %47
  %p49 = scmp.eq.s32.totalorder %s48, 0
  %p50 = pneg %p49
  %52 = shalt.err (%p50)

</llo_original>
